<compile_context>
chip_gen: v6e
topology: v6e:2x2x1
jax: 0.10.0
libtpu: 0.0.40
codegen_flags: <defaults>
</compile_context>

<pallas_src>
import functools

import jax
import jax.numpy as jnp
from jax.experimental import pallas as pl
from jax.experimental.pallas import tpu as pltpu


def _log_sigmoid(x):
    # numerically stable log(sigmoid(x)) = min(x, 0) - log1p(exp(-|x|))
    return jnp.minimum(x, 0.0) - jnp.log1p(jnp.exp(-jnp.abs(x)))


def _dpo_kernel(x_ref, loss_ref, rewards_ref, *,
                beta, label_smoothing, ipo, batch, need_mask):
    f32 = jnp.float32
    # In-kernel cast: free VPU op, keeps the input DMA at native width.
    pc = x_ref[0].astype(f32)   # (rows, cols) policy chosen logps
    pr = x_ref[1].astype(f32)   # (rows, cols) policy rejected logps
    rc = x_ref[2].astype(f32)   # (rows, cols) reference chosen logps
    rr = x_ref[3].astype(f32)   # (rows, cols) reference rejected logps

    # Reuse the reward differences for the logits:
    #   logits = (pc - pr) - (rc - rr) = (pc - rc) - (pr - rr)
    cr = pc - rc                 # chosen reward / beta
    rj = pr - rr                 # rejected reward / beta
    logits = cr - rj

    if ipo:
        losses = (logits - 1.0 / (2.0 * beta)) ** 2
    else:
        z = beta * logits
        # -(1-s)*logsig(z) - s*logsig(-z) == -logsig(z) + s*z
        # (since logsig(-z) = logsig(z) - z); one transcendental pair total.
        losses = label_smoothing * z - _log_sigmoid(z)

    if need_mask:
        rows, cols = losses.shape
        idx = (jax.lax.broadcasted_iota(jnp.int32, (rows, cols), 0) * cols
               + jax.lax.broadcasted_iota(jnp.int32, (rows, cols), 1))
        losses = jnp.where(idx < batch, losses, 0.0)

    # Scalar loss (mean over the true batch) -> SMEM output.
    loss_ref[0, 0] = jnp.sum(losses) * (1.0 / float(batch))

    # Stacked rewards slab: one fat output store/DMA.
    rewards_ref[0] = (beta * cr).astype(rewards_ref.dtype)
    rewards_ref[1] = (beta * rj).astype(rewards_ref.dtype)


def dpo_loss(policy_chosen_logps,
             policy_rejected_logps,
             reference_chosen_logps,
             reference_rejected_logps,
             *, beta: float, label_smoothing: float = 0.0, ipo: bool = False):
    """Pallas implementation of DPOLoss.forward.

    Inputs are (B,) float vectors (any float dtype).  Returns
    (loss_scalar_f32, chosen_rewards(B,), rejected_rewards(B,)).
    """
    (b,) = policy_chosen_logps.shape
    in_dtype = policy_chosen_logps.dtype
    f32 = jnp.float32

    # Lane-dense layout:
    #   B <= 128 -> single (1, B) row (one vreg either way).
    #   B  > 128 -> (ceil(B/128), 128), padded up to a multiple of 128 lanes.
    if b <= 128:
        rows, cols = 1, b
    else:
        cols = 128
        rows = pl.cdiv(b, cols)
    padded = rows * cols
    need_mask = padded != b

    # One stacked input -> a single input DMA instead of four tiny ones.
    x = jnp.stack([policy_chosen_logps, policy_rejected_logps,
                   reference_chosen_logps, reference_rejected_logps], axis=0)
    if need_mask:
        x = jnp.pad(x, ((0, 0), (0, padded - b)))
    x = x.reshape(4, rows, cols)

    kernel = functools.partial(
        _dpo_kernel,
        beta=float(beta),
        label_smoothing=float(label_smoothing),
        ipo=bool(ipo),
        batch=int(b),
        need_mask=bool(need_mask),
    )

    itemsize = jnp.dtype(in_dtype).itemsize
    cost = pl.CostEstimate(
        flops=12 * b,
        transcendentals=(0 if ipo else 2 * b),
        bytes_accessed=6 * b * itemsize + 4,
    )

    loss, rewards = pl.pallas_call(
        kernel,
        out_shape=(
            jax.ShapeDtypeStruct((1, 1), f32),                  # loss (SMEM)
            jax.ShapeDtypeStruct((2, rows, cols), in_dtype),    # rewards
        ),
        in_specs=[pl.BlockSpec(memory_space=pltpu.MemorySpace.VMEM)],
        out_specs=(
            pl.BlockSpec(memory_space=pltpu.MemorySpace.SMEM),
            pl.BlockSpec(memory_space=pltpu.MemorySpace.VMEM),
        ),
        cost_estimate=cost,
    )(x)

    rewards = rewards.reshape(2, padded)[:, :b]
    # TODO(synk): for very large B (hundreds of thousands+), add a batch grid
    # ("parallel" axis so v7x's two TensorCores split it; tiles sized for
    # v7x's 64 MiB VMEM) and raise vmem_limit_bytes for v5e's 16 MiB default
    # scoped-VMEM; unnecessary at typical DPO batch sizes.
    return loss[0, 0], rewards[0], rewards[1]


def _reference_dpo_loss(pc, pr, rc, rr, *, beta, label_smoothing=0.0, ipo=False):
    pc, pr, rc, rr = (x.astype(jnp.float32) for x in (pc, pr, rc, rr))
    pi_logratios = pc - pr
    ref_logratios = rc - rr
    logits = pi_logratios - ref_logratios
    if ipo:
        losses = (logits - 1.0 / (2.0 * beta)) ** 2
    else:
        losses = (-jax.nn.log_sigmoid(beta * logits) * (1.0 - label_smoothing)
                  - jax.nn.log_sigmoid(-beta * logits) * label_smoothing)
    loss = losses.mean()
    chosen_rewards = beta * (pc - rc)
    rejected_rewards = beta * (pr - rr)
    return loss, chosen_rewards, rejected_rewards


def _check(loss, chosen, rejected, ref, atol, rtol):
    ref_loss, ref_chosen, ref_rejected = ref
    assert jnp.allclose(loss, ref_loss, atol=atol, rtol=rtol)
    assert jnp.allclose(chosen.astype(jnp.float32), ref_chosen, atol=atol, rtol=rtol)
    assert jnp.allclose(rejected.astype(jnp.float32), ref_rejected, atol=atol, rtol=rtol)


def _make_inputs(key, b):
    k1, k2, k3, k4, key = jax.random.split(key, 5)
    pc = -jnp.abs(jax.random.normal(k1, (b,), jnp.float32)) * 5.0
    pr = -jnp.abs(jax.random.normal(k2, (b,), jnp.float32)) * 5.0
    rc = -jnp.abs(jax.random.normal(k3, (b,), jnp.float32)) * 5.0
    rr = -jnp.abs(jax.random.normal(k4, (b,), jnp.float32)) * 5.0
    return (pc, pr, rc, rr), key


if __name__ == "__main__":
    key = jax.random.PRNGKey(0)
    beta = 0.1
    label_smoothing = 0.05

    # --- case 1: small batch (single-row layout), sigmoid path, f32 ---
    (pc, pr, rc, rr), key = _make_inputs(key, 8)
    out = dpo_loss(pc, pr, rc, rr, beta=beta, label_smoothing=label_smoothing)
    jax.block_until_ready(out)
    ref = _reference_dpo_loss(pc, pr, rc, rr, beta=beta,
                              label_smoothing=label_smoothing)
    _check(*out, ref, atol=1e-5, rtol=1e-5)

    # --- case 2: B > 128, not a multiple of 128 (padded + masked path) ---
    (pc, pr, rc, rr), key = _make_inputs(key, 200)
    out = dpo_loss(pc, pr, rc, rr, beta=beta, label_smoothing=label_smoothing)
    jax.block_until_ready(out)
    ref = _reference_dpo_loss(pc, pr, rc, rr, beta=beta,
                              label_smoothing=label_smoothing)
    _check(*out, ref, atol=1e-5, rtol=1e-5)

    # --- case 3: lane-dense batch (B % 128 == 0), sigmoid path, f32 ---
    (pc, pr, rc, rr), key = _make_inputs(key, 256)
    out = dpo_loss(pc, pr, rc, rr, beta=beta, label_smoothing=label_smoothing)
    jax.block_until_ready(out)
    ref = _reference_dpo_loss(pc, pr, rc, rr, beta=beta,
                              label_smoothing=label_smoothing)
    _check(*out, ref, atol=1e-5, rtol=1e-5)

    # --- case 4: IPO branch on the dense layout ---
    out = dpo_loss(pc, pr, rc, rr, beta=beta, ipo=True)
    jax.block_until_ready(out)
    ref = _reference_dpo_loss(pc, pr, rc, rr, beta=beta, ipo=True)
    _check(*out, ref, atol=1e-5, rtol=1e-5)

    # --- case 5: bf16 inputs (exercises the in-kernel cast) ---
    pcb, prb, rcb, rrb = (x.astype(jnp.bfloat16) for x in (pc, pr, rc, rr))
    out = dpo_loss(pcb, prb, rcb, rrb, beta=beta,
                   label_smoothing=label_smoothing)
    jax.block_until_ready(out)
    ref = _reference_dpo_loss(pcb, prb, rcb, rrb, beta=beta,
                              label_smoothing=label_smoothing)
    _check(*out, ref, atol=2e-2, rtol=2e-2)

    print("KERNEL_OK")
</pallas_src>

<mosaic_0001>
module attributes {stable_mosaic.version = 11 : i64} {
  func.func @_dpo_kernel(%arg0: memref<4x1x8xf32, #tpu.memory_space<vmem>>, %arg1: memref<1x1xf32, #tpu.memory_space<smem>>, %arg2: memref<2x1x8xf32, #tpu.memory_space<vmem>>) attributes {dimension_semantics = [], scalar_prefetch = 0 : i64, scratch_operands = 0 : i64, tpu.core_type = #tpu.core_type<tc>} {
    %c0 = arith.constant 0 : index
    %c0_0 = arith.constant 0 : index
    %c0_1 = arith.constant 0 : index
    %0 = vector.load %arg0[%c0, %c0_0, %c0_1] : memref<4x1x8xf32, #tpu.memory_space<vmem>>, vector<1x1x8xf32>
    %1 = vector.shape_cast %0 : vector<1x1x8xf32> to vector<1x8xf32>
    %c1 = arith.constant 1 : index
    %c0_2 = arith.constant 0 : index
    %c0_3 = arith.constant 0 : index
    %2 = vector.load %arg0[%c1, %c0_2, %c0_3] : memref<4x1x8xf32, #tpu.memory_space<vmem>>, vector<1x1x8xf32>
    %3 = vector.shape_cast %2 : vector<1x1x8xf32> to vector<1x8xf32>
    %c2 = arith.constant 2 : index
    %c0_4 = arith.constant 0 : index
    %c0_5 = arith.constant 0 : index
    %4 = vector.load %arg0[%c2, %c0_4, %c0_5] : memref<4x1x8xf32, #tpu.memory_space<vmem>>, vector<1x1x8xf32>
    %5 = vector.shape_cast %4 : vector<1x1x8xf32> to vector<1x8xf32>
    %c3 = arith.constant 3 : index
    %c0_6 = arith.constant 0 : index
    %c0_7 = arith.constant 0 : index
    %6 = vector.load %arg0[%c3, %c0_6, %c0_7] : memref<4x1x8xf32, #tpu.memory_space<vmem>>, vector<1x1x8xf32>
    %7 = vector.shape_cast %6 : vector<1x1x8xf32> to vector<1x8xf32>
    %8 = arith.subf %1, %5 : vector<1x8xf32>
    %9 = arith.subf %3, %7 : vector<1x8xf32>
    %10 = arith.subf %8, %9 : vector<1x8xf32>
    %cst = arith.constant 1.000000e-01 : f32
    %11 = vector.broadcast %cst : f32 to vector<1x8xf32>
    %12 = arith.mulf %11, %10 : vector<1x8xf32>
    %cst_8 = arith.constant 5.000000e-02 : f32
    %13 = vector.broadcast %cst_8 : f32 to vector<1x8xf32>
    %14 = arith.mulf %13, %12 : vector<1x8xf32>
    %cst_9 = arith.constant 0.000000e+00 : f32
    %15 = vector.broadcast %cst_9 : f32 to vector<1x8xf32>
    %16 = arith.minimumf %12, %15 : vector<1x8xf32>
    %17 = math.absf %12 : vector<1x8xf32>
    %cst_10 = arith.constant 0.000000e+00 : f32
    %18 = vector.broadcast %cst_10 : f32 to vector<1x8xf32>
    %19 = arith.subf %18, %17 : vector<1x8xf32>
    %20 = math.exp %19 : vector<1x8xf32>
    %21 = math.log1p %20 : vector<1x8xf32>
    %22 = arith.subf %16, %21 : vector<1x8xf32>
    %23 = arith.subf %14, %22 : vector<1x8xf32>
    %24 = vector.shape_cast %23 : vector<1x8xf32> to vector<1x1x8xf32>
    %cst_11 = arith.constant dense<0.000000e+00> : vector<1xf32>
    %25 = vector.multi_reduction <add>, %24, %cst_11 [1, 2] : vector<1x1x8xf32> to vector<1xf32>
    %26 = vector.shape_cast %25 : vector<1xf32> to vector<1x1x1xf32>
    %27 = vector.extract %26[0, 0, 0] : f32 from vector<1x1x1xf32>
    %cst_12 = arith.constant 1.250000e-01 : f32
    %28 = arith.mulf %27, %cst_12 : f32
    %c0_13 = arith.constant 0 : index
    %c0_14 = arith.constant 0 : index
    %29 = memref.load %arg1[%c0_13, %c0_14] : memref<1x1xf32, #tpu.memory_space<smem>>
    memref.store %28, %arg1[%c0_13, %c0_14] : memref<1x1xf32, #tpu.memory_space<smem>>
    %cst_15 = arith.constant 1.000000e-01 : f32
    %30 = vector.broadcast %cst_15 : f32 to vector<1x8xf32>
    %31 = arith.mulf %30, %8 : vector<1x8xf32>
    %c0_16 = arith.constant 0 : index
    %c0_17 = arith.constant 0 : index
    %c0_18 = arith.constant 0 : index
    %32 = vector.load %arg2[%c0_16, %c0_17, %c0_18] : memref<2x1x8xf32, #tpu.memory_space<vmem>>, vector<1x1x8xf32>
    %33 = vector.shape_cast %32 : vector<1x1x8xf32> to vector<1x8xf32>
    %34 = vector.shape_cast %31 : vector<1x8xf32> to vector<1x1x8xf32>
    tpu.vector_store %arg2[%c0_16, %c0_17, %c0_18], %34 {strides = array<i32>} : memref<2x1x8xf32, #tpu.memory_space<vmem>>, vector<1x1x8xf32>,
    %cst_19 = arith.constant 1.000000e-01 : f32
    %35 = vector.broadcast %cst_19 : f32 to vector<1x8xf32>
    %36 = arith.mulf %35, %9 : vector<1x8xf32>
    %c1_20 = arith.constant 1 : index
    %c0_21 = arith.constant 0 : index
    %c0_22 = arith.constant 0 : index
    %37 = vector.load %arg2[%c1_20, %c0_21, %c0_22] : memref<2x1x8xf32, #tpu.memory_space<vmem>>, vector<1x1x8xf32>
    %38 = vector.shape_cast %37 : vector<1x1x8xf32> to vector<1x8xf32>
    %39 = vector.shape_cast %36 : vector<1x8xf32> to vector<1x1x8xf32>
    tpu.vector_store %arg2[%c1_20, %c0_21, %c0_22], %39 {strides = array<i32>} : memref<2x1x8xf32, #tpu.memory_space<vmem>>, vector<1x1x8xf32>,
    return
  }
}

</mosaic_0001>

<llo_original>
// kernel: tpu_custom_call.1
$region0: #{tpu_custom_call.1}
  #allocation0 [shape = 'u32[]', space=smem, size = 0x4, offset = 0x4, fixed_abs, tag = 'smem constant byte address 0x4 - core index']
  #allocation1 [shape = 'u32[144,128]{1,0:T(1,128)}', space=vmem, size = 0x12000, scoped, tag = 'internal scratch']
  %s0 = inlined_call_operand.hbm [shape: f32[4,1,8], index: 0, kind: input, shape index: {}]
  %s1 = inlined_call_operand.hbm [shape: f32[1,1], index: 1, kind: output, shape index: {0}]
  %s2 = inlined_call_operand.hbm [shape: f32[2,1,8], index: 2, kind: output, shape index: {1}]
  %3 = xla_tuple %s1, %s2
  %s4 = sld [smem:[#allocation0]]
  $region26: #{tpu_custom_call.1} parent=0
    _
  %s6 = ssub.s32 1, %s4
  %s7 = scalar_select 0, %s6, %s4
  $region1: #{tpu_custom_call.1} parent=0
    #allocation2 [shape = 'u8[2048]{0}', space=vmem, size = 0x800, scoped, tag = 'input window, operand 0, single buffered']
    #allocation3 [shape = 's32[1]{0}', space=sflag, size = 0x4, scoped, tag = 'scoped memory for tpu_custom_call.1']
    #allocation4 [shape = 's32[1]{0}', space=sflag, size = 0x4, scoped, tag = 'scoped memory for tpu_custom_call.1']
    #allocation5 [shape = 's32[1]{0}', space=sflag, size = 0x4, scoped, tag = 'scoped memory for tpu_custom_call.1']
    #allocation6 [shape = 'u8[512]{0}', space=smem, size = 0x200, scoped, tag = 'output window, operand 0, single buffered']
    #allocation7 [shape = 'u8[1024]{0}', space=vmem, size = 0x400, scoped, tag = 'output window, operand 1, single buffered']
    %8 = vsyncpa [#allocation3], 0
    %9 = vsyncpa [#allocation5], 0
    %10 = vsyncpa [#allocation4], 0
    // Predicated region
    $region2: #{tpu_custom_call.1} parent=1 // pred_check
      _
    $region3: #{tpu_custom_call.1} parent=1 // pred_check_branch
      %12 = sbr.rel (0) target = $region5
    $region4: #{tpu_custom_call.1} parent=1 // pred_region
      %s14 = ssub.s32 64, 64
      %15 = vsyncadd [#allocation3], %s14
      %s16 = sshll.u32 [#allocation2], 4
      %s17 = int_to_ptr.vmem [resolvable:$true] %s16
      %22 = dma.hbm_to_vmem [thread:$0]  %s0, 64, %s17, [#allocation3], 16, 16, 1
    $region5: #{tpu_custom_call.1} parent=1 // pred_fallthru
      _
    // Predicated region
    $region6: #{tpu_custom_call.1} parent=1 // pred_check
      _
    $region7: #{tpu_custom_call.1} parent=1 // pred_check_branch
      %24 = sbr.rel (0) target = $region9
    $region8: #{tpu_custom_call.1} parent=1 // pred_region
      %25 = dma.done [#allocation3], 64
    $region9: #{tpu_custom_call.1} parent=1 // pred_fallthru
      _
    %v26 = vld [vmem:[#allocation2] sm:$0x1]
    %s27 = scalar_lea.vmem [#allocation2], 1
    %v28 = vld [vmem:[%s27] sm:$0x1]
    %s29 = scalar_lea.vmem [#allocation2], 2
    %v30 = vld [vmem:[%s29] sm:$0x1]
    %s31 = scalar_lea.vmem [#allocation2], 3
    %v32 = vld [vmem:[%s31] sm:$0x1]
    %v33 = vsub.f32 %v26, %v30
    %v34 = vsub.f32 %v28, %v32
    %v35 = vsub.f32 %v33, %v34
    %v36 = vmul.f32 %v35, 0.1
    %v37 = vmul.f32 %v36, 0.05
    %v38 = vmin.f32 %v36, 0.0
    %v39 = vand.u32 2147483647, %v36
    %v40 = vsub.f32 0.0, %v39
    %v41 = vmul.f32 %v40, 1.442695
    %v42 = vpow.pop %v41
    %v43 = vadd.f32 %v42, 1.0
    %v44 = vlog2.pop %v43
    %v45 = vmul.f32 %v44, 0.6931472
    %v46 = vmul.f32 -0.5, %v42
    %v47 = vadd.f32 %v46, 1.0
    %v48 = vmul.f32 %v47, %v42
    %v49 = vand.u32 2147483647, %v42
    %vm50 = vcmp.lt.f32.partialorder %v49, 0.0004427343
    %v51 = vsel %vm50, %v48, %v45
    %v52 = vsub.f32 %v38, %v51
    %v53 = vsub.f32 %v37, %v52
    %vm54 = vcmask 57344
    %v55 = vsel %vm54, %v53, 0.0
    %56 = vadd.xlane.f32.xlu0 %v55
    %v57 = vpop.xlane.xlu0 %56
    %v58 = vrot.slane %v57, 4
    %v59 = vadd.f32 %v57, %v58
    %v60 = vrot.slane %v59, 2
    %v61 = vadd.f32 %v59, %v60
    %v62 = vrot.slane %v61, 1
    %v63 = vadd.f32 %v61, %v62
    %s64 = vtos %v63
    %s65 = smul.f32 %s64, 0.125
    %s66 = scalar_lea.smem [#allocation6], 0
    %67 = sst [smem:[%s66]] %s65
    %v68 = vmul.f32 %v33, 0.1
    %69 = vst.msk [vmem:[#allocation7] sm:$0x1] %vm54, %v68
    %v70 = vmul.f32 %v34, 0.1
    %s71 = scalar_lea.vmem [#allocation7], 1
    %72 = vst.msk [vmem:[%s71] sm:$0x1] %vm54, %v70
    // Predicated region
    $region10: #{tpu_custom_call.1} parent=1 // pred_check
      _
    $region11: #{tpu_custom_call.1} parent=1 // pred_check_branch
      %74 = sbr.rel (0) target = $region13
    $region12: #{tpu_custom_call.1} parent=1 // pred_region
      %s76 = ssub.s32 16, 16
      %77 = vsyncadd [#allocation5], %s76
      %80 = dma.smem_to_hbm [#allocation6], 16, %s1, [#allocation5]
    $region13: #{tpu_custom_call.1} parent=1 // pred_fallthru
      _
    // Predicated region
    $region14: #{tpu_custom_call.1} parent=1 // pred_check
      _
    $region15: #{tpu_custom_call.1} parent=1 // pred_check_branch
      %82 = sbr.rel (0) target = $region17
    $region16: #{tpu_custom_call.1} parent=1 // pred_region
      %s84 = ssub.s32 32, 32
      %85 = vsyncadd [#allocation4], %s84
      %s86 = sshll.u32 [#allocation7], 4
      %s87 = int_to_ptr.vmem [resolvable:$true] %s86
      %92 = dma.vmem_to_hbm [thread:$0]  %s87, 32, %s2, [#allocation4], 16, 16, 1
    $region17: #{tpu_custom_call.1} parent=1 // pred_fallthru
      _
    // Predicated region
    $region18: #{tpu_custom_call.1} parent=1 // pred_check
      _
    $region19: #{tpu_custom_call.1} parent=1 // pred_check_branch
      %94 = sbr.rel (0) target = $region21
    $region20: #{tpu_custom_call.1} parent=1 // pred_region
      %95 = dma.done [#allocation5], 16
    $region21: #{tpu_custom_call.1} parent=1 // pred_fallthru
      _
    // Predicated region
    $region22: #{tpu_custom_call.1} parent=1 // pred_check
      _
    $region23: #{tpu_custom_call.1} parent=1 // pred_check_branch
      %97 = sbr.rel (0) target = $region25
    $region24: #{tpu_custom_call.1} parent=1 // pred_region
      %98 = dma.done [#allocation4], 32
    $region25: #{tpu_custom_call.1} parent=1 // pred_fallthru
      _
    %99 = sfence
    %100 = vsyncpa [#allocation3], 1
    %101 = vsyncpa [#allocation4], 1
    %102 = vsyncpa [#allocation5], 1

</llo_original>
